<compile_context>
chip_gen: v5e
topology: v5e:2x2
jax: 0.10.0
libtpu: 0.0.40
codegen_flags: <defaults>
</compile_context>

<pallas_src>
import jax
import jax.numpy as jnp
from jax.experimental import pallas as pl
from jax.experimental.pallas import tpu as pltpu


# --------------------------------------------------------------------------
# Kernel: one image per grid step, everything in (H, W*channels) lane-dense
# layout.  Refs: x (1,H,W*C) f32 | w1 (W*C,W*Ci) bf16 | b1 (1,W*Ci) f32 |
# w2 (3,W*Ci,W*Ci) bf16 | b2 (1,W*Ci) f32 | w3 (W*Ci,W*C) bf16 | b3 (1,W*C) f32
# --------------------------------------------------------------------------
def bottleneck_kernel(x_ref, w1_ref, b1_ref, w2_ref, b2_ref, w3_ref, b3_ref,
                      o_ref):
    H = x_ref.shape[1]
    x = x_ref[0]                                          # (H, W*C) f32, lane-dense

    # --- main_conv_block_1: 1x1 conv (block-diag matmul) + BN(bias) + ReLU ---
    t1 = jnp.dot(x.astype(jnp.bfloat16), w1_ref[...],
                 preferred_element_type=jnp.float32)
    t1 = jnp.maximum(t1 + b1_ref[...], 0.0)               # (H, W*Cint) f32

    # --- main_conv_block_2: 3x3 conv, padding=1, + BN(bias) + ReLU ---
    # W-direction padding is baked into the banded weight matrices; H-direction
    # shifts are sublane rolls (XLU) with edge masks (VPU).  3 matmuls, unrolled.
    row = jax.lax.broadcasted_iota(jnp.int32, (H, 1), 0)
    t1_km1 = jnp.where(row >= 1, pltpu.roll(t1, 1, 0), 0.0)        # rows h-1
    t1_kp1 = jnp.where(row <= H - 2, pltpu.roll(t1, H - 1, 0), 0.0)  # rows h+1
    acc = jnp.dot(t1_km1.astype(jnp.bfloat16), w2_ref[0],
                  preferred_element_type=jnp.float32)
    acc += jnp.dot(t1.astype(jnp.bfloat16), w2_ref[1],
                   preferred_element_type=jnp.float32)
    acc += jnp.dot(t1_kp1.astype(jnp.bfloat16), w2_ref[2],
                   preferred_element_type=jnp.float32)
    t2 = jnp.maximum(acc + b2_ref[...], 0.0)               # (H, W*Cint) f32

    # --- main_conv_block_3: 1x1 conv (block-diag matmul) + BN(bias) + ReLU ---
    t3 = jnp.dot(t2.astype(jnp.bfloat16), w3_ref[...],
                 preferred_element_type=jnp.float32)
    t3 = jnp.maximum(t3 + b3_ref[...], 0.0)                # (H, W*C) f32

    # --- dropout (p=0 -> identity), residual add + final ReLU (f32 epilogue) ---
    o_ref[0] = jnp.maximum(t3 + x, 0.0)                    # dense 256-lane store


# --------------------------------------------------------------------------
# Wrapper-side weight preprocessing (one-time): BN-scale folding, block-diag
# 1x1 weights, banded (W-padding-baked) 3x3 row matrices, tiled bias rows.
# --------------------------------------------------------------------------
def _block_diag(wm, W):
    """(Cin, Cout) -> (W*Cin, W*Cout) block diagonal."""
    eye = jnp.eye(W, dtype=wm.dtype)
    Cin, Cout = wm.shape
    return jnp.einsum('vw,cd->vcwd', eye, wm).reshape(W * Cin, W * Cout)


def _conv3x3_row_matrices(w2_eff, W):
    """(9, Cint, Cint) [kh*3+kw, ci, co] -> (3, W*Cint, W*Cint) banded matrices.

    T[kh][(w_in)*Cint+ci, w*Cint+co] = w2[kh, w_in-w+1, ci, co] if |w_in-w|<=1,
    else 0 — this bakes the W-direction zero padding into the matmul."""
    Cint = w2_eff.shape[-1]
    w2_4d = w2_eff.reshape(3, 3, Cint, Cint)
    v = jnp.arange(W)
    w = jnp.arange(W)
    q = jnp.arange(3)
    ind = (v[None, :, None] == w[None, None, :] + q[:, None, None] - 1)
    ind = ind.astype(w2_eff.dtype)                         # (3, W, W)
    T = jnp.einsum('qvw,kqcd->kvcwd', ind, w2_4d)
    return T.reshape(3, W * Cint, W * Cint)


def build_params(w1, s1, b1, w2, s2, b2, w3, s3, b3, W):
    """Fold BN scales into conv weights, build lane-dense matmul weights."""
    Cint = w1.shape[1]
    C = w3.shape[1]
    w1_eff = w1 * s1.reshape(1, -1)
    w2_eff = w2 * s2.reshape(1, 1, -1)
    w3_eff = w3 * s3.reshape(1, -1)
    w1_big = _block_diag(w1_eff, W).astype(jnp.bfloat16)          # (W*C, W*Cint)
    w2_T = _conv3x3_row_matrices(w2_eff, W).astype(jnp.bfloat16)  # (3, W*Ci, W*Ci)
    w3_big = _block_diag(w3_eff, W).astype(jnp.bfloat16)          # (W*Cint, W*C)
    b1_row = jnp.tile(b1.reshape(-1), W).reshape(1, W * Cint).astype(jnp.float32)
    b2_row = jnp.tile(b2.reshape(-1), W).reshape(1, W * Cint).astype(jnp.float32)
    b3_row = jnp.tile(b3.reshape(-1), W).reshape(1, W * C).astype(jnp.float32)
    return w1_big, b1_row, w2_T, b2_row, w3_big, b3_row


def regular_bottleneck_block(x_nchw, params):
    """Forward pass; takes/returns NCHW like the PyTorch module."""
    w1_big, b1_row, w2_T, b2_row, w3_big, b3_row = params
    N, C, H, W = x_nchw.shape
    WC = W * C
    WCint = w1_big.shape[1]
    Cint = WCint // W

    # NCHW -> lane-dense per-image slabs (N, H, W*C); minor dim = 256 lanes.
    x_rows = jnp.transpose(x_nchw, (0, 2, 3, 1)).reshape(N, H, WC)

    flops = 2 * N * H * W * (C * Cint + 9 * Cint * Cint + Cint * C)
    bytes_accessed = int(
        (x_rows.size + N * H * WC) * 4
        + (w1_big.size + w2_T.size + w3_big.size) * 2
        + (b1_row.size + b2_row.size + b3_row.size) * 4)

    out_rows = pl.pallas_call(
        bottleneck_kernel,
        out_shape=jax.ShapeDtypeStruct((N, H, WC), jnp.float32),
        grid_spec=pltpu.PrefetchScalarGridSpec(
            num_scalar_prefetch=0,
            grid=(N,),
            in_specs=[
                pl.BlockSpec((1, H, WC), lambda n: (n, 0, 0)),
                pl.BlockSpec(w1_big.shape, lambda n: (0, 0)),
                pl.BlockSpec(b1_row.shape, lambda n: (0, 0)),
                pl.BlockSpec(w2_T.shape, lambda n: (0, 0, 0)),
                pl.BlockSpec(b2_row.shape, lambda n: (0, 0)),
                pl.BlockSpec(w3_big.shape, lambda n: (0, 0)),
                pl.BlockSpec(b3_row.shape, lambda n: (0, 0)),
            ],
            out_specs=pl.BlockSpec((1, H, WC), lambda n: (n, 0, 0)),
        ),
        compiler_params=pltpu.CompilerParams(
            dimension_semantics=("parallel",)),
        cost_estimate=pl.CostEstimate(
            flops=int(flops), transcendentals=0,
            bytes_accessed=bytes_accessed),
    )(x_rows, w1_big, b1_row, w2_T, b2_row, w3_big, b3_row)

    return jnp.transpose(out_rows.reshape(N, H, W, C), (0, 3, 1, 2))  # -> NCHW


# --------------------------------------------------------------------------
# Pure-JAX f32 reference of the same forward pass (NHWC, unfolded BN form).
# --------------------------------------------------------------------------
def reference(x_nhwc, w1, s1, b1, w2, s2, b2, w3, s3, b3):
    N, H, W, C = x_nhwc.shape
    Cint = w1.shape[1]
    t1 = jnp.maximum(jnp.einsum('nhwc,cd->nhwd', x_nhwc, w1) * s1 + b1, 0.0)
    t1p = jnp.pad(t1, ((0, 0), (1, 1), (1, 1), (0, 0)))
    acc = jnp.zeros((N, H, W, Cint), jnp.float32)
    for kh in range(3):
        for kw in range(3):
            acc = acc + jnp.einsum('nhwc,cd->nhwd',
                                   t1p[:, kh:kh + H, kw:kw + W, :],
                                   w2[kh * 3 + kw])
    t2 = jnp.maximum(acc * s2 + b2, 0.0)
    t3 = jnp.maximum(jnp.einsum('nhwc,cd->nhwd', t2, w3) * s3 + b3, 0.0)
    return jnp.maximum(t3 + x_nhwc, 0.0)


if __name__ == "__main__":
    N, C, H, W = 2, 16, 16, 16
    internal_ratio = 4
    Cint = C // internal_ratio

    key = jax.random.PRNGKey(0)
    keys = jax.random.split(key, 16)

    # Input (PyTorch NCHW convention).
    x_nchw = jax.random.normal(keys[0], (N, C, H, W), jnp.float32)

    # Conv weights (bias=False), stored in matmul layout:
    # w1: (Cin, Cout), w2: (kh*3+kw, Cin, Cout), w3: (Cin, Cout).
    w1 = jax.random.normal(keys[1], (C, Cint), jnp.float32) * 0.2
    w2 = jax.random.normal(keys[2], (9, Cint, Cint), jnp.float32) * 0.2
    w3 = jax.random.normal(keys[3], (Cint, C), jnp.float32) * 0.2

    # BatchNorm (eval mode) parameters folded to per-channel scale/bias.
    def bn_params(kg, kb, km, kv, ch):
        gamma = 1.0 + 0.1 * jax.random.normal(kg, (ch,), jnp.float32)
        beta = 0.1 * jax.random.normal(kb, (ch,), jnp.float32)
        mean = 0.1 * jax.random.normal(km, (ch,), jnp.float32)
        var = jnp.abs(jax.random.normal(kv, (ch,), jnp.float32)) + 0.5
        scale = gamma / jnp.sqrt(var + 1e-5)
        bias = beta - mean * scale
        return scale, bias

    s1, b1 = bn_params(keys[4], keys[5], keys[6], keys[7], Cint)
    s2, b2 = bn_params(keys[8], keys[9], keys[10], keys[11], Cint)
    s3, b3 = bn_params(keys[12], keys[13], keys[14], keys[15], C)

    params = build_params(w1, s1, b1, w2, s2, b2, w3, s3, b3, W)
    out_nchw = regular_bottleneck_block(x_nchw, params)
    out_nchw = jax.block_until_ready(out_nchw)
    assert out_nchw.shape == (N, C, H, W)

    x_nhwc = jnp.transpose(x_nchw, (0, 2, 3, 1))
    ref_nhwc = reference(x_nhwc, w1, s1, b1, w2, s2, b2, w3, s3, b3)
    out_nhwc = jnp.transpose(out_nchw, (0, 2, 3, 1))

    # bf16 matmul operands (f32 accumulation) -> tolerance loosened vs pure f32.
    max_err = float(jnp.max(jnp.abs(out_nhwc - ref_nhwc)))
    assert jnp.allclose(out_nhwc, ref_nhwc, atol=5e-2, rtol=5e-2), \
        f"mismatch vs reference, max abs err = {max_err}"

    # TODO(synk): training-mode Dropout2d (p>0), PReLU/Mish activations and the
    # asymmetric-conv variant of block 2 are config branches not exercised here.
    print("KERNEL_OK")
</pallas_src>

<mosaic_0001>
module attributes {stable_mosaic.version = 11 : i64} {
  func.func @bottleneck_kernel(%arg0: i32, %arg1: memref<1x16x256xf32, #tpu.memory_space<vmem>>, %arg2: memref<256x64xbf16, #tpu.memory_space<vmem>>, %arg3: memref<1x64xf32, #tpu.memory_space<vmem>>, %arg4: memref<3x64x64xbf16, #tpu.memory_space<vmem>>, %arg5: memref<1x64xf32, #tpu.memory_space<vmem>>, %arg6: memref<64x256xbf16, #tpu.memory_space<vmem>>, %arg7: memref<1x256xf32, #tpu.memory_space<vmem>>, %arg8: memref<1x16x256xf32, #tpu.memory_space<vmem>>) attributes {dimension_semantics = [#tpu.dimension_semantics<parallel>], iteration_bounds = array<i64: 2>, scalar_prefetch = 0 : i64, scratch_operands = 0 : i64, tpu.core_type = #tpu.core_type<tc>, window_params = [{transform_indices = @transform_0, window_bounds = array<i64: 1, 16, 256>}, {pipeline_mode = #tpu.pipeline_mode<synchronous>, transform_indices = @transform_1, window_bounds = array<i64: 256, 64>}, {pipeline_mode = #tpu.pipeline_mode<synchronous>, transform_indices = @transform_2, window_bounds = array<i64: 1, 64>}, {pipeline_mode = #tpu.pipeline_mode<synchronous>, transform_indices = @transform_3, window_bounds = array<i64: 3, 64, 64>}, {pipeline_mode = #tpu.pipeline_mode<synchronous>, transform_indices = @transform_4, window_bounds = array<i64: 1, 64>}, {pipeline_mode = #tpu.pipeline_mode<synchronous>, transform_indices = @transform_5, window_bounds = array<i64: 64, 256>}, {pipeline_mode = #tpu.pipeline_mode<synchronous>, transform_indices = @transform_6, window_bounds = array<i64: 1, 256>}, {transform_indices = @transform_7, window_bounds = array<i64: 1, 16, 256>}]} {
    %c0 = arith.constant 0 : index
    %c0_0 = arith.constant 0 : index
    %c0_1 = arith.constant 0 : index
    %0 = vector.load %arg1[%c0, %c0_0, %c0_1] : memref<1x16x256xf32, #tpu.memory_space<vmem>>, vector<1x16x256xf32>
    %1 = vector.shape_cast %0 : vector<1x16x256xf32> to vector<16x256xf32>
    %2 = arith.truncf %1 : vector<16x256xf32> to vector<16x256xbf16>
    %c0_2 = arith.constant 0 : index
    %c0_3 = arith.constant 0 : index
    %3 = vector.load %arg2[%c0_2, %c0_3] : memref<256x64xbf16, #tpu.memory_space<vmem>>, vector<256x64xbf16>
    %cst = arith.constant dense<0.000000e+00> : vector<16x64xf32>
    %4 = tpu.matmul %2, %3, %cst {dimension_numbers = #tpu.dot_dimension_numbers<[1], [0], [0], [1], [0, 0, 1, 1], [], []>} : vector<16x256xbf16>, vector<256x64xbf16>, vector<16x64xf32> -> vector<16x64xf32>
    %c0_4 = arith.constant 0 : index
    %c0_5 = arith.constant 0 : index
    %5 = vector.load %arg3[%c0_4, %c0_5] : memref<1x64xf32, #tpu.memory_space<vmem>>, vector<1x64xf32>
    %6 = vector.broadcast %5 : vector<1x64xf32> to vector<16x64xf32>
    %7 = arith.addf %4, %6 : vector<16x64xf32>
    %cst_6 = arith.constant 0.000000e+00 : f32
    %8 = vector.broadcast %cst_6 : f32 to vector<16x64xf32>
    %9 = arith.maximumf %7, %8 : vector<16x64xf32>
    %10 = tpu.iota {dimensions = array<i32: 0>} : vector<16x1xi32>
    %c1_i32 = arith.constant 1 : i32
    %11 = vector.broadcast %c1_i32 : i32 to vector<16x1xi32>
    %12 = arith.cmpi sge, %10, %11 : vector<16x1xi32>
    %c1_i32_7 = arith.constant 1 : i32
    %13 = tpu.dynamic_rotate %9 by %c1_i32_7 dim 0 : vector<16x64xf32>, i32 -> vector<16x64xf32>
    %cst_8 = arith.constant 0.000000e+00 : f32
    %14 = vector.shape_cast %12 : vector<16x1xi1> to vector<16x1xi1>
    %15 = vector.broadcast %14 : vector<16x1xi1> to vector<16x64xi1>
    %16 = vector.broadcast %cst_8 : f32 to vector<16x64xf32>
    %17 = arith.select %15, %13, %16 : vector<16x64xi1>, vector<16x64xf32>
    %c14_i32 = arith.constant 14 : i32
    %18 = vector.broadcast %c14_i32 : i32 to vector<16x1xi32>
    %19 = arith.cmpi sle, %10, %18 : vector<16x1xi32>
    %c15_i32 = arith.constant 15 : i32
    %20 = tpu.dynamic_rotate %9 by %c15_i32 dim 0 : vector<16x64xf32>, i32 -> vector<16x64xf32>
    %cst_9 = arith.constant 0.000000e+00 : f32
    %21 = vector.shape_cast %19 : vector<16x1xi1> to vector<16x1xi1>
    %22 = vector.broadcast %21 : vector<16x1xi1> to vector<16x64xi1>
    %23 = vector.broadcast %cst_9 : f32 to vector<16x64xf32>
    %24 = arith.select %22, %20, %23 : vector<16x64xi1>, vector<16x64xf32>
    %25 = arith.truncf %17 : vector<16x64xf32> to vector<16x64xbf16>
    %c0_10 = arith.constant 0 : index
    %c0_11 = arith.constant 0 : index
    %c0_12 = arith.constant 0 : index
    %26 = vector.load %arg4[%c0_10, %c0_11, %c0_12] : memref<3x64x64xbf16, #tpu.memory_space<vmem>>, vector<1x64x64xbf16>
    %27 = vector.shape_cast %26 : vector<1x64x64xbf16> to vector<64x64xbf16>
    %cst_13 = arith.constant dense<0.000000e+00> : vector<16x64xf32>
    %28 = tpu.matmul %25, %27, %cst_13 {dimension_numbers = #tpu.dot_dimension_numbers<[1], [0], [0], [1], [0, 0, 1, 1], [], []>} : vector<16x64xbf16>, vector<64x64xbf16>, vector<16x64xf32> -> vector<16x64xf32>
    %29 = arith.truncf %9 : vector<16x64xf32> to vector<16x64xbf16>
    %c1 = arith.constant 1 : index
    %c0_14 = arith.constant 0 : index
    %c0_15 = arith.constant 0 : index
    %30 = vector.load %arg4[%c1, %c0_14, %c0_15] : memref<3x64x64xbf16, #tpu.memory_space<vmem>>, vector<1x64x64xbf16>
    %31 = vector.shape_cast %30 : vector<1x64x64xbf16> to vector<64x64xbf16>
    %cst_16 = arith.constant dense<0.000000e+00> : vector<16x64xf32>
    %32 = tpu.matmul %29, %31, %cst_16 {dimension_numbers = #tpu.dot_dimension_numbers<[1], [0], [0], [1], [0, 0, 1, 1], [], []>} : vector<16x64xbf16>, vector<64x64xbf16>, vector<16x64xf32> -> vector<16x64xf32>
    %33 = arith.addf %28, %32 : vector<16x64xf32>
    %34 = arith.truncf %24 : vector<16x64xf32> to vector<16x64xbf16>
    %c2 = arith.constant 2 : index
    %c0_17 = arith.constant 0 : index
    %c0_18 = arith.constant 0 : index
    %35 = vector.load %arg4[%c2, %c0_17, %c0_18] : memref<3x64x64xbf16, #tpu.memory_space<vmem>>, vector<1x64x64xbf16>
    %36 = vector.shape_cast %35 : vector<1x64x64xbf16> to vector<64x64xbf16>
    %cst_19 = arith.constant dense<0.000000e+00> : vector<16x64xf32>
    %37 = tpu.matmul %34, %36, %cst_19 {dimension_numbers = #tpu.dot_dimension_numbers<[1], [0], [0], [1], [0, 0, 1, 1], [], []>} : vector<16x64xbf16>, vector<64x64xbf16>, vector<16x64xf32> -> vector<16x64xf32>
    %38 = arith.addf %33, %37 : vector<16x64xf32>
    %c0_20 = arith.constant 0 : index
    %c0_21 = arith.constant 0 : index
    %39 = vector.load %arg5[%c0_20, %c0_21] : memref<1x64xf32, #tpu.memory_space<vmem>>, vector<1x64xf32>
    %40 = vector.broadcast %39 : vector<1x64xf32> to vector<16x64xf32>
    %41 = arith.addf %38, %40 : vector<16x64xf32>
    %cst_22 = arith.constant 0.000000e+00 : f32
    %42 = vector.broadcast %cst_22 : f32 to vector<16x64xf32>
    %43 = arith.maximumf %41, %42 : vector<16x64xf32>
    %44 = arith.truncf %43 : vector<16x64xf32> to vector<16x64xbf16>
    %c0_23 = arith.constant 0 : index
    %c0_24 = arith.constant 0 : index
    %45 = vector.load %arg6[%c0_23, %c0_24] : memref<64x256xbf16, #tpu.memory_space<vmem>>, vector<64x256xbf16>
    %cst_25 = arith.constant dense<0.000000e+00> : vector<16x256xf32>
    %46 = tpu.matmul %44, %45, %cst_25 {dimension_numbers = #tpu.dot_dimension_numbers<[1], [0], [0], [1], [0, 0, 1, 1], [], []>} : vector<16x64xbf16>, vector<64x256xbf16>, vector<16x256xf32> -> vector<16x256xf32>
    %c0_26 = arith.constant 0 : index
    %c0_27 = arith.constant 0 : index
    %47 = vector.load %arg7[%c0_26, %c0_27] : memref<1x256xf32, #tpu.memory_space<vmem>>, vector<1x256xf32>
    %48 = vector.broadcast %47 : vector<1x256xf32> to vector<16x256xf32>
    %49 = arith.addf %46, %48 : vector<16x256xf32>
    %cst_28 = arith.constant 0.000000e+00 : f32
    %50 = vector.broadcast %cst_28 : f32 to vector<16x256xf32>
    %51 = arith.maximumf %49, %50 : vector<16x256xf32>
    %52 = arith.addf %51, %1 : vector<16x256xf32>
    %cst_29 = arith.constant 0.000000e+00 : f32
    %53 = vector.broadcast %cst_29 : f32 to vector<16x256xf32>
    %54 = arith.maximumf %52, %53 : vector<16x256xf32>
    %c0_30 = arith.constant 0 : index
    %c0_31 = arith.constant 0 : index
    %c0_32 = arith.constant 0 : index
    %55 = vector.load %arg8[%c0_30, %c0_31, %c0_32] : memref<1x16x256xf32, #tpu.memory_space<vmem>>, vector<1x16x256xf32>
    %56 = vector.shape_cast %55 : vector<1x16x256xf32> to vector<16x256xf32>
    %57 = vector.shape_cast %54 : vector<16x256xf32> to vector<1x16x256xf32>
    tpu.vector_store %arg8[%c0_30, %c0_31, %c0_32], %57 {strides = array<i32>} : memref<1x16x256xf32, #tpu.memory_space<vmem>>, vector<1x16x256xf32>,
    return
  }
  func.func @transform_0(%arg0: i32) -> (i32, i32, i32) {
    %c0_i32 = arith.constant 0 : i32
    %c0_i32_0 = arith.constant 0 : i32
    %c0_i32_1 = arith.constant 0 : i32
    return %arg0, %c0_i32, %c0_i32_0 : i32, i32, i32
  }
  func.func @transform_1(%arg0: i32) -> (i32, i32) {
    %c0_i32 = arith.constant 0 : i32
    %c0_i32_0 = arith.constant 0 : i32
    %c0_i32_1 = arith.constant 0 : i32
    return %c0_i32, %c0_i32_0 : i32, i32
  }
  func.func @transform_2(%arg0: i32) -> (i32, i32) {
    %c0_i32 = arith.constant 0 : i32
    %c0_i32_0 = arith.constant 0 : i32
    %c0_i32_1 = arith.constant 0 : i32
    return %c0_i32, %c0_i32_0 : i32, i32
  }
  func.func @transform_3(%arg0: i32) -> (i32, i32, i32) {
    %c0_i32 = arith.constant 0 : i32
    %c0_i32_0 = arith.constant 0 : i32
    %c0_i32_1 = arith.constant 0 : i32
    %c0_i32_2 = arith.constant 0 : i32
    return %c0_i32, %c0_i32_0, %c0_i32_1 : i32, i32, i32
  }
  func.func @transform_4(%arg0: i32) -> (i32, i32) {
    %c0_i32 = arith.constant 0 : i32
    %c0_i32_0 = arith.constant 0 : i32
    %c0_i32_1 = arith.constant 0 : i32
    return %c0_i32, %c0_i32_0 : i32, i32
  }
  func.func @transform_5(%arg0: i32) -> (i32, i32) {
    %c0_i32 = arith.constant 0 : i32
    %c0_i32_0 = arith.constant 0 : i32
    %c0_i32_1 = arith.constant 0 : i32
    return %c0_i32, %c0_i32_0 : i32, i32
  }
  func.func @transform_6(%arg0: i32) -> (i32, i32) {
    %c0_i32 = arith.constant 0 : i32
    %c0_i32_0 = arith.constant 0 : i32
    %c0_i32_1 = arith.constant 0 : i32
    return %c0_i32, %c0_i32_0 : i32, i32
  }
  func.func @transform_7(%arg0: i32) -> (i32, i32, i32) {
    %c0_i32 = arith.constant 0 : i32
    %c0_i32_0 = arith.constant 0 : i32
    %c0_i32_1 = arith.constant 0 : i32
    return %arg0, %c0_i32, %c0_i32_0 : i32, i32, i32
  }
}

</mosaic_0001>

<llo_original>
// kernel: tpu_custom_call.1
$region0: #{tpu_custom_call.1}
  #allocation0 [shape = 'u32[]', space=smem, size = 0x4, offset = 0x4, fixed_abs, tag = 'smem constant byte address 0x4 - core index']
  #allocation1 [shape = 'u32[72,128]{1,0:T(1,128)}', space=vmem, size = 0x9000, scoped, tag = 'internal scratch']
  %s0 = inlined_call_operand.vmem [shape: f32[2,16,256], index: 0, kind: input, shape index: {}]
  %s1 = inlined_call_operand.vmem [shape: bf16[256,64], index: 1, kind: input, shape index: {}]
  %s2 = inlined_call_operand.vmem [shape: f32[1,64], index: 2, kind: input, shape index: {}]
  %s3 = inlined_call_operand.vmem [shape: bf16[3,64,64], index: 3, kind: input, shape index: {}]
  %s4 = inlined_call_operand.vmem [shape: f32[1,64], index: 4, kind: input, shape index: {}]
  %s5 = inlined_call_operand.hbm [shape: bf16[64,256], index: 5, kind: input, shape index: {}]
  %s6 = inlined_call_operand.vmem [shape: f32[1,256], index: 6, kind: input, shape index: {}]
  %s7 = inlined_call_operand.hbm [shape: f32[2,16,256], index: 7, kind: output, shape index: {}]
  %s8 = sld [smem:[#allocation0]]
  $region65: #{tpu_custom_call.1} parent=0
    _
  %s10 = ssub.s32 1, %s8
  %s11 = scalar_select 0, %s10, %s8
  $region1: #{tpu_custom_call.1} parent=0
    #allocation2 [shape = 'u8[32768]{0}', space=vmem, size = 0x8000, scoped, tag = 'input window, operand 5, single buffered']
    #allocation3 [shape = 's32[2]{0}', space=sflag, size = 0x8, scoped, tag = 'scoped memory for tpu_custom_call.1']
    #allocation4 [shape = 's32[2]{0}', space=sflag, size = 0x8, scoped, tag = 'scoped memory for tpu_custom_call.1']
    #allocation5 [shape = 'u8[32768]{0}', space=vmem, size = 0x8000, scoped, tag = 'output window, operand 0']
    %12 = vsyncpa [#allocation3], 0
    %13 = vsyncpa [#allocation4], 0
    %s14 = scalar_lea.sflag [#allocation4], 1
    %15 = vsyncpa %s14, 0
    loop: start=0, step=1, limit=4
    $region2: #{tpu_custom_call.1} parent=1 // loop_pre_header
      _
    $region3: #{tpu_custom_call.1} parent=1 // loop_header
      %s17 = sphi 0, %s21
      %p18 = scmp.ge.s32.totalorder %s17, 4
      %s27 = sphi 0, %s29
      %s30 = sphi 0, %s27
      %s31 = sphi 0, %s30
      %s47 = sphi 0, %s31
      %s51 = sphi 0, %s51
      %s53 = sphi 0, %s51
      %s54 = sphi 0, %s53
      %s68 = sphi 0, %s54
      %s72 = sphi 0, %s72
      %s74 = sphi 0, %s72
      %s75 = sphi 0, %s74
      %s89 = sphi 0, %s75
      %s93 = sphi 0, %s93
      %s95 = sphi 0, %s93
      %s96 = sphi 0, %s95
      %s110 = sphi 0, %s96
      %s114 = sphi 0, %s114
      %s116 = sphi 0, %s114
      %s117 = sphi 0, %s116
      %s131 = sphi 0, %s117
      %s135 = sphi 0, %s135
      %s137 = sphi 0, %s135
      %s138 = sphi 0, %s137
      %s152 = sphi 0, %s138
      %s156 = sphi 0, %s156
      %s158 = sphi 0, %s156
      %s159 = sphi 0, %s158
      %s173 = sphi 0, %s159
      %s179 = sphi 0, %s181
      %s182 = sphi 0, %s179
      %s183 = sphi 0, %s182
      %s199 = sphi 0, %s183
    $region4: #{tpu_custom_call.1} parent=1 // loop_header_branch
      %20 = sbr.rel (%p18) target = $region8
    $region5: #{tpu_custom_call.1} parent=1 // loop_body
      %s22 = ssub.s32 %s17, 1
      %s23 = ssub.s32 %s17, 2
      %s24 = sadd.s32 %s17, 1
      %s25 = ssub.s32 %s17, %s24
      %p26 = scmp.eq.s32.totalorder %s25, 0
      %s28 = sadd.s32 %s27, 1
      %s29 = scalar_select %p26, %s27, %s28
      %p32 = pneg %p26
      %p33 = scmp.eq.s32.totalorder %s17, 1
      %p34 = por %p32, %p33
      %p35 = scmp.ne.s32.totalorder %s27, %s30
      %p36 = scmp.eq.s32.totalorder %s17, 0
      %p37 = por %p35, %p36
      %p38 = scmp.ne.s32.totalorder %s27, %s30
      %p39 = scmp.eq.s32.totalorder %s22, 1
      %p40 = por %p38, %p39
      %p41 = scmp.ne.s32.totalorder %s30, %s31
      %p42 = scmp.eq.s32.totalorder %s22, 0
      %p43 = por %p41, %p42
      %p44 = scmp.ne.s32.totalorder %s30, %s31
      %p45 = scmp.eq.s32.totalorder %s23, 1
      %p46 = por %p44, %p45
      %p48 = scmp.ne.s32.totalorder %s31, %s47
      %p49 = scmp.eq.s32.totalorder %s23, 0
      %p50 = por %p48, %p49
      %s52 = sadd.s32 %s51, 1
      %p55 = scmp.eq.s32.totalorder %s17, 1
      %p56 = scmp.ne.s32.totalorder %s51, %s53
      %p57 = scmp.eq.s32.totalorder %s17, 0
      %p58 = por %p56, %p57
      %p59 = scmp.ne.s32.totalorder %s51, %s53
      %p60 = scmp.eq.s32.totalorder %s22, 1
      %p61 = por %p59, %p60
      %p62 = scmp.ne.s32.totalorder %s53, %s54
      %p63 = scmp.eq.s32.totalorder %s22, 0
      %p64 = por %p62, %p63
      %p65 = scmp.ne.s32.totalorder %s53, %s54
      %p66 = scmp.eq.s32.totalorder %s23, 1
      %p67 = por %p65, %p66
      %p69 = scmp.ne.s32.totalorder %s54, %s68
      %p70 = scmp.eq.s32.totalorder %s23, 0
      %p71 = por %p69, %p70
      %s73 = sadd.s32 %s72, 1
      %p76 = scmp.eq.s32.totalorder %s17, 1
      %p77 = scmp.ne.s32.totalorder %s72, %s74
      %p78 = scmp.eq.s32.totalorder %s17, 0
      %p79 = por %p77, %p78
      %p80 = scmp.ne.s32.totalorder %s72, %s74
      %p81 = scmp.eq.s32.totalorder %s22, 1
      %p82 = por %p80, %p81
      %p83 = scmp.ne.s32.totalorder %s74, %s75
      %p84 = scmp.eq.s32.totalorder %s22, 0
      %p85 = por %p83, %p84
      %p86 = scmp.ne.s32.totalorder %s74, %s75
      %p87 = scmp.eq.s32.totalorder %s23, 1
      %p88 = por %p86, %p87
      %p90 = scmp.ne.s32.totalorder %s75, %s89
      %p91 = scmp.eq.s32.totalorder %s23, 0
      %p92 = por %p90, %p91
      %s94 = sadd.s32 %s93, 1
      %p97 = scmp.eq.s32.totalorder %s17, 1
      %p98 = scmp.ne.s32.totalorder %s93, %s95
      %p99 = scmp.eq.s32.totalorder %s17, 0
      %p100 = por %p98, %p99
      %p101 = scmp.ne.s32.totalorder %s93, %s95
      %p102 = scmp.eq.s32.totalorder %s22, 1
      %p103 = por %p101, %p102
      %p104 = scmp.ne.s32.totalorder %s95, %s96
      %p105 = scmp.eq.s32.totalorder %s22, 0
      %p106 = por %p104, %p105
      %p107 = scmp.ne.s32.totalorder %s95, %s96
      %p108 = scmp.eq.s32.totalorder %s23, 1
      %p109 = por %p107, %p108
      %p111 = scmp.ne.s32.totalorder %s96, %s110
      %p112 = scmp.eq.s32.totalorder %s23, 0
      %p113 = por %p111, %p112
      %s115 = sadd.s32 %s114, 1
      %p118 = scmp.eq.s32.totalorder %s17, 1
      %p119 = scmp.ne.s32.totalorder %s114, %s116
      %p120 = scmp.eq.s32.totalorder %s17, 0
      %p121 = por %p119, %p120
      %p122 = scmp.ne.s32.totalorder %s114, %s116
      %p123 = scmp.eq.s32.totalorder %s22, 1
      %p124 = por %p122, %p123
      %p125 = scmp.ne.s32.totalorder %s116, %s117
      %p126 = scmp.eq.s32.totalorder %s22, 0
      %p127 = por %p125, %p126
      %p128 = scmp.ne.s32.totalorder %s116, %s117
      %p129 = scmp.eq.s32.totalorder %s23, 1
      %p130 = por %p128, %p129
      %p132 = scmp.ne.s32.totalorder %s117, %s131
      %p133 = scmp.eq.s32.totalorder %s23, 0
      %p134 = por %p132, %p133
      %s136 = sadd.s32 %s135, 1
      %p139 = scmp.eq.s32.totalorder %s17, 1
      %p140 = scmp.ne.s32.totalorder %s135, %s137
      %p141 = scmp.eq.s32.totalorder %s17, 0
      %p142 = por %p140, %p141
      %p143 = scmp.ne.s32.totalorder %s135, %s137
      %p144 = scmp.eq.s32.totalorder %s22, 1
      %p145 = por %p143, %p144
      %p146 = scmp.ne.s32.totalorder %s137, %s138
      %p147 = scmp.eq.s32.totalorder %s22, 0
      %p148 = por %p146, %p147
      %p149 = scmp.ne.s32.totalorder %s137, %s138
      %p150 = scmp.eq.s32.totalorder %s23, 1
      %p151 = por %p149, %p150
      %p153 = scmp.ne.s32.totalorder %s138, %s152
      %p154 = scmp.eq.s32.totalorder %s23, 0
      %p155 = por %p153, %p154
      %s157 = sadd.s32 %s156, 1
      %p160 = scmp.eq.s32.totalorder %s17, 1
      %p161 = scmp.ne.s32.totalorder %s156, %s158
      %p162 = scmp.eq.s32.totalorder %s17, 0
      %p163 = por %p161, %p162
      %p164 = scmp.ne.s32.totalorder %s156, %s158
      %p165 = scmp.eq.s32.totalorder %s22, 1
      %p166 = por %p164, %p165
      %p167 = scmp.ne.s32.totalorder %s158, %s159
      %p168 = scmp.eq.s32.totalorder %s22, 0
      %p169 = por %p167, %p168
      %p170 = scmp.ne.s32.totalorder %s158, %s159
      %p171 = scmp.eq.s32.totalorder %s23, 1
      %p172 = por %p170, %p171
      %p174 = scmp.ne.s32.totalorder %s159, %s173
      %p175 = scmp.eq.s32.totalorder %s23, 0
      %p176 = por %p174, %p175
      %s177 = ssub.s32 %s17, %s24
      %p178 = scmp.eq.s32.totalorder %s177, 0
      %s180 = sadd.s32 %s179, 1
      %s181 = scalar_select %p178, %s179, %s180
      %p184 = pneg %p178
      %p185 = scmp.eq.s32.totalorder %s17, 1
      %p186 = por %p184, %p185
      %p187 = scmp.ne.s32.totalorder %s179, %s182
      %p188 = scmp.eq.s32.totalorder %s17, 0
      %p189 = por %p187, %p188
      %p190 = scmp.ne.s32.totalorder %s179, %s182
      %p191 = scmp.eq.s32.totalorder %s22, 1
      %p192 = por %p190, %p191
      %p193 = scmp.ne.s32.totalorder %s182, %s183
      %p194 = scmp.eq.s32.totalorder %s22, 0
      %p195 = por %p193, %p194
      %p196 = scmp.ne.s32.totalorder %s182, %s183
      %p197 = scmp.eq.s32.totalorder %s23, 1
      %p198 = por %p196, %p197
      %p200 = scmp.ne.s32.totalorder %s183, %s199
      %p201 = scmp.eq.s32.totalorder %s23, 0
      %p202 = por %p200, %p201
      %p203 = scmp.le.s32.totalorder 1, %s17
      %p204 = scmp.lt.s32.totalorder %s17, 3
      %p205 = pnand %p203, %p204
      %p206 = pneg %p205
      // Predicated region
      $region9: #{tpu_custom_call.1} parent=5 // pred_check
        _
      $region10: #{tpu_custom_call.1} parent=5 // pred_check_branch
        %208 = sbr.rel (%p205) target = $region12
      $region11: #{tpu_custom_call.1} parent=5 // pred_region
        %s209 = ssub.s32 %s17, 1
        // Predicated region
        $region13: #{tpu_custom_call.1} parent=11 // pred_check
          %p210 = pneg %p64
        $region14: #{tpu_custom_call.1} parent=11 // pred_check_branch
          %212 = sbr.rel (%p210) target = $region16
        $region15: #{tpu_custom_call.1} parent=11 // pred_region
          _
        $region16: #{tpu_custom_call.1} parent=11 // pred_fallthru
          _
        // Predicated region
        $region17: #{tpu_custom_call.1} parent=11 // pred_check
          %p213 = pneg %p85
        $region18: #{tpu_custom_call.1} parent=11 // pred_check_branch
          %215 = sbr.rel (%p213) target = $region20
        $region19: #{tpu_custom_call.1} parent=11 // pred_region
          _
        $region20: #{tpu_custom_call.1} parent=11 // pred_fallthru
          _
        // Predicated region
        $region21: #{tpu_custom_call.1} parent=11 // pred_check
          %p216 = pneg %p106
        $region22: #{tpu_custom_call.1} parent=11 // pred_check_branch
          %218 = sbr.rel (%p216) target = $region24
        $region23: #{tpu_custom_call.1} parent=11 // pred_region
          _
        $region24: #{tpu_custom_call.1} parent=11 // pred_fallthru
          _
        // Predicated region
        $region25: #{tpu_custom_call.1} parent=11 // pred_check
          %p219 = pneg %p127
        $region26: #{tpu_custom_call.1} parent=11 // pred_check_branch
          %221 = sbr.rel (%p219) target = $region28
        $region27: #{tpu_custom_call.1} parent=11 // pred_region
          _
        $region28: #{tpu_custom_call.1} parent=11 // pred_fallthru
          _
        // Predicated region
        $region29: #{tpu_custom_call.1} parent=11 // pred_check
          %p222 = pneg %p148
        $region30: #{tpu_custom_call.1} parent=11 // pred_check_branch
          %224 = sbr.rel (%p222) target = $region32
        $region31: #{tpu_custom_call.1} parent=11 // pred_region
          %226 = vsyncadd [#allocation3], 0
          %s227 = sshll.u32 %s5, 4
          %s228 = int_to_ptr.hbm [resolvable:$true] %s227
          %s229 = sshll.u32 [#allocation2], 4
          %s230 = int_to_ptr.vmem [resolvable:$true] %s229
          %235 = dma.hbm_to_vmem [thread:$0]  %s228, 1024, %s230, [#allocation3], 128, 128, 8
        $region32: #{tpu_custom_call.1} parent=11 // pred_fallthru
          _
        // Predicated region
        $region33: #{tpu_custom_call.1} parent=11 // pred_check
          %p236 = pneg %p169
        $region34: #{tpu_custom_call.1} parent=11 // pred_check_branch
          %238 = sbr.rel (%p236) target = $region36
        $region35: #{tpu_custom_call.1} parent=11 // pred_region
          _
        $region36: #{tpu_custom_call.1} parent=11 // pred_fallthru
          _
      $region12: #{tpu_custom_call.1} parent=5 // pred_fallthru
        _
      %p239 = scmp.lt.s32.totalorder %s17, 2
      // Predicated region
      $region37: #{tpu_custom_call.1} parent=5 // pred_check
        %p240 = pneg %p239
      $region38: #{tpu_custom_call.1} parent=5 // pred_check_branch
        %242 = sbr.rel (%p240) target = $region40
      $region39: #{tpu_custom_call.1} parent=5 // pred_region
        // Predicated region
        $region41: #{tpu_custom_call.1} parent=39 // pred_check
          %p243 = pneg %p37
        $region42: #{tpu_custom_call.1} parent=39 // pred_check_branch
          %245 = sbr.rel (%p243) target = $region44
        $region43: #{tpu_custom_call.1} parent=39 // pred_region
          %p246 = scmp.lt.s32.totalorder %s17, 1
          %s247 = scalar_select %p246, %s17, 1
          %s248 = smul.addr %s247, 4
          %s249 = smul.addr %s248, 8
          %s250 = scalar_lea.vmem %s0, %s249
        $region44: #{tpu_custom_call.1} parent=39 // pred_fallthru
          _
      $region40: #{tpu_custom_call.1} parent=5 // pred_fallthru
        _
      %p251 = scmp.le.s32.totalorder 1, %s17
      %p252 = scmp.lt.s32.totalorder %s17, 3
      %p253 = pnand %p251, %p252
      %p254 = pneg %p253
      // Predicated region
      $region45: #{tpu_custom_call.1} parent=5 // pred_check
        _
      $region46: #{tpu_custom_call.1} parent=5 // pred_check_branch
        %256 = sbr.rel (%p253) target = $region48
      $region47: #{tpu_custom_call.1} parent=5 // pred_region
        %s257 = ssub.s32 %s17, 1
        // Predicated region
        $region49: #{tpu_custom_call.1} parent=47 // pred_check
          %p258 = pneg %p148
        $region50: #{tpu_custom_call.1} parent=47 // pred_check_branch
          %260 = sbr.rel (%p258) target = $region52
        $region51: #{tpu_custom_call.1} parent=47 // pred_region
          %262 = dma.done [#allocation3], 1024
        $region52: #{tpu_custom_call.1} parent=47 // pred_fallthru
          _
        %p263 = scmp.lt.s32.totalorder %s22, 1
        %s264 = scalar_select %p263, %s22, 1
        %s265 = smul.addr %s264, 4
        %s266 = smul.addr %s265, 8
        %s267 = scalar_lea.vmem %s0, %s266
        %p268 = pneg %p43
        %p269 = pneg %p40
        %p270 = pneg %p64
        %p271 = pneg %p61
        %p272 = pneg %p85
        %p273 = pneg %p82
        %p274 = pneg %p106
        %p275 = pneg %p103
        %p276 = pneg %p127
        %p277 = pneg %p124
        %p278 = pneg %p148
        %p279 = pneg %p145
        %p280 = pneg %p169
        %p281 = pneg %p166
        %p282 = pneg %p195
        %p283 = pneg %p192
        %s284 = sand.u32 %s182, 1
        %s285 = scalar_lea.sflag [#allocation4], %s284
        %s286 = sand.u32 %s182, 1
        %s287 = smul.addr %s286, 32
        %s288 = scalar_lea.vmem [#allocation5], %s287
        %p289 = scmp.lt.s32.totalorder %s22, 1
        %s290 = scalar_select %p289, %s22, 1
        %s291 = smul.addr %s290, 4
        %s292 = smul.addr %s291, 8
        %s293 = scalar_lea.vmem %s0, %s292
        %v295 = vld [vmem:[%s293] sm:$0xff]
        %v296 = vld [vmem:[%s293 + $0x8] sm:$0xff]
        %v297 = vld [vmem:[%s293 + $0x10] sm:$0xff]
        %v298 = vld [vmem:[%s293 + $0x18] sm:$0xff]
        %v299 = vpack.c.bf16 %v297, %v295
        %v300 = vpack.c.bf16 %v298, %v296
        %v301 = vld [vmem:[%s1] sm:$0xf]
        %v302 = vld [vmem:[%s1 + $0x4] sm:$0xf]
        %v303 = vld [vmem:[%s1 + $0x8] sm:$0xf]
        %v304 = vld [vmem:[%s1 + $0xc] sm:$0xf]
        %v305 = vld [vmem:[%s1 + $0x10] sm:$0xf]
        %v306 = vld [vmem:[%s1 + $0x14] sm:$0xf]
        %v307 = vld [vmem:[%s1 + $0x18] sm:$0xf]
        %v308 = vld [vmem:[%s1 + $0x1c] sm:$0xf]
        %v309 = vld [vmem:[%s1 + $0x20] sm:$0xf]
        %v310 = vld [vmem:[%s1 + $0x24] sm:$0xf]
        %v311 = vld [vmem:[%s1 + $0x28] sm:$0xf]
        %v312 = vld [vmem:[%s1 + $0x2c] sm:$0xf]
        %v313 = vld [vmem:[%s1 + $0x30] sm:$0xf]
        %v314 = vld [vmem:[%s1 + $0x34] sm:$0xf]
        %v315 = vld [vmem:[%s1 + $0x38] sm:$0xf]
        %v316 = vld [vmem:[%s1 + $0x3c] sm:$0xf]
        %v317 = vld [vmem:[%s1 + $0x40] sm:$0xf]
        %v318 = vld [vmem:[%s1 + $0x44] sm:$0xf]
        %v319 = vld [vmem:[%s1 + $0x48] sm:$0xf]
        %v320 = vld [vmem:[%s1 + $0x4c] sm:$0xf]
        %v321 = vld [vmem:[%s1 + $0x50] sm:$0xf]
        %v322 = vld [vmem:[%s1 + $0x54] sm:$0xf]
        %v323 = vld [vmem:[%s1 + $0x58] sm:$0xf]
        %v324 = vld [vmem:[%s1 + $0x5c] sm:$0xf]
        %v325 = vld [vmem:[%s1 + $0x60] sm:$0xf]
        %v326 = vld [vmem:[%s1 + $0x64] sm:$0xf]
        %v327 = vld [vmem:[%s1 + $0x68] sm:$0xf]
        %v328 = vld [vmem:[%s1 + $0x6c] sm:$0xf]
        %v329 = vld [vmem:[%s1 + $0x70] sm:$0xf]
        %v330 = vld [vmem:[%s1 + $0x74] sm:$0xf]
        %v331 = vld [vmem:[%s1 + $0x78] sm:$0xf]
        %v332 = vld [vmem:[%s1 + $0x7c] sm:$0xf]
        %v333 = vld [vmem:[%s2] sm:$0x1]
        %v335 = vperm.slane %v333, 0
        %v369 = vunpack.c.l.b16 %v301
        %v370 = vunpack.c.l.b16 %v302
        %v371 = vunpack.c.l.b16 %v303
        %v372 = vunpack.c.l.b16 %v304
        %v373 = vunpack.c.l.b16 %v305
        %v374 = vunpack.c.l.b16 %v306
        %v375 = vunpack.c.l.b16 %v307
        %v376 = vunpack.c.l.b16 %v308
        %v377 = vunpack.c.l.b16 %v309
        %v378 = vunpack.c.l.b16 %v310
        %v379 = vunpack.c.l.b16 %v311
        %v380 = vunpack.c.l.b16 %v312
        %v381 = vunpack.c.l.b16 %v313
        %v382 = vunpack.c.l.b16 %v314
        %v383 = vunpack.c.l.b16 %v315
        %v384 = vunpack.c.l.b16 %v316
        %v385 = vunpack.c.l.b16 %v317
        %v386 = vunpack.c.l.b16 %v318
        %v387 = vunpack.c.l.b16 %v319
        %v388 = vunpack.c.l.b16 %v320
        %v389 = vunpack.c.l.b16 %v321
        %v390 = vunpack.c.l.b16 %v322
        %v391 = vunpack.c.l.b16 %v323
        %v392 = vunpack.c.l.b16 %v324
        %v393 = vunpack.c.l.b16 %v325
        %v394 = vunpack.c.l.b16 %v326
        %v395 = vunpack.c.l.b16 %v327
        %v396 = vunpack.c.l.b16 %v328
        %v397 = vunpack.c.l.b16 %v329
        %v398 = vunpack.c.l.b16 %v330
        %v399 = vunpack.c.l.b16 %v331
        %v400 = vunpack.c.l.b16 %v332
        %v401 = vpack.c.b16 %v370, %v369
        %v402 = vpack.c.b16 %v372, %v371
        %v403 = vpack.c.b16 %v374, %v373
        %v404 = vpack.c.b16 %v376, %v375
        %v405 = vpack.c.b16 %v378, %v377
        %v406 = vpack.c.b16 %v380, %v379
        %v407 = vpack.c.b16 %v382, %v381
        %v408 = vpack.c.b16 %v384, %v383
        %v409 = vpack.c.b16 %v386, %v385
        %v410 = vpack.c.b16 %v388, %v387
        %v411 = vpack.c.b16 %v390, %v389
        %v412 = vpack.c.b16 %v392, %v391
        %v413 = vpack.c.b16 %v394, %v393
        %v414 = vpack.c.b16 %v396, %v395
        %v415 = vpack.c.b16 %v398, %v397
        %v416 = vpack.c.b16 %v400, %v399
        %433 = vmatpush.bf16.msra.mxu0 %v408
        %434 = vmatpush.bf16.msra.mxu0 %v407
        %435 = vmatpush.bf16.msra.mxu0 %v406
        %436 = vmatpush.bf16.msra.mxu0 %v405
        %437 = vmatpush.bf16.msra.mxu0 %v404
        %438 = vmatpush.bf16.msra.mxu0 %v403
        %439 = vmatpush.bf16.msra.mxu0 %v402
        %440 = vmatpush.bf16.msra.mxu0 %v401
        %441 = vmatmul.bf16.gmra.mxu0 %v299
        %v442 = vpop.f32.mrf.mxu0
        %v443 = vadd.f32 %v335, %v442
        %v444 = vpop.f32.mrf.mxu0
        %v445 = vadd.f32 %v335, %v444
        %446 = vdwg.mxu0
        %447 = vmatpush.bf16.msra.mxu0 %v416
        %448 = vmatpush.bf16.msra.mxu0 %v415
        %449 = vmatpush.bf16.msra.mxu0 %v414
        %450 = vmatpush.bf16.msra.mxu0 %v413
        %451 = vmatpush.bf16.msra.mxu0 %v412
        %452 = vmatpush.bf16.msra.mxu0 %v411
        %453 = vmatpush.bf16.msra.mxu0 %v410
        %454 = vmatpush.bf16.msra.mxu0 %v409
        %455 = vmatmul.bf16.gmra.mxu0 %v300
        %v456 = vpop.f32.mrf.mxu0
        %v457 = vadd.f32 %v443, %v456
        %v458 = vpop.f32.mrf.mxu0
        %v459 = vadd.f32 %v445, %v458
        %460 = vdwg.mxu0
        %v461 = vmax.f32 %v457, 0.0
        %v462 = vmax.f32 %v459, 0.0
        %v463 = vlaneseq
        %v464 = vshrl.u32 %v463, 7
        %v465 = vadd.s32 %v464, 8
        %vm466 = vcmp.ge.s32.totalorder %v464, 1
        %vm467 = vcmp.ge.s32.totalorder %v465, 1
        %v468 = vrot.slane %v461, 7
        %v469 = vrot.slane %v462, 7
        %vm470 = vcmp.lt.s32.totalorder %v464, 1
        %v471 = vsel %vm470, %v468, %v469
        %v472 = vsel %vm470, %v469, %v468
        %v473 = vsel %vm466, 1, 0
        %v474 = vsel %vm467, 1, 0
        %vm475 = vcmp.eq.s32.totalorder %v473, 1
        %vm476 = vcmp.eq.s32.totalorder %v474, 1
        %v477 = vsel %vm475, %v472, 0.0
        %v478 = vsel %vm476, %v471, 0.0
        %vm479 = vcmp.le.s32.totalorder %v464, 14
        %vm480 = vcmp.le.s32.totalorder %v465, 14
        %v481 = vrot.slane %v461, 1
        %v482 = vrot.slane %v462, 1
        %vm483 = vcmp.lt.s32.totalorder %v464, 7
        %v484 = vsel %vm483, %v481, %v482
        %v485 = vsel %vm483, %v482, %v481
        %v486 = vsel %vm479, 1, 0
        %v487 = vsel %vm480, 1, 0
        %vm488 = vcmp.eq.s32.totalorder %v486, 1
        %vm489 = vcmp.eq.s32.totalorder %v487, 1
        %v490 = vsel %vm488, %v484, 0.0
        %v491 = vsel %vm489, %v485, 0.0
        %v492 = vpack.c.bf16 %v478, %v477
        %v493 = vld [vmem:[%s3] sm:$0xf]
        %v494 = vld [vmem:[%s3 + $0x4] sm:$0xf]
        %v495 = vld [vmem:[%s3 + $0x8] sm:$0xf]
        %v496 = vld [vmem:[%s3 + $0xc] sm:$0xf]
        %v497 = vld [vmem:[%s3 + $0x10] sm:$0xf]
        %v498 = vld [vmem:[%s3 + $0x14] sm:$0xf]
        %v499 = vld [vmem:[%s3 + $0x18] sm:$0xf]
        %v500 = vld [vmem:[%s3 + $0x1c] sm:$0xf]
        %v501 = vpack.c.bf16 %v462, %v461
        %s502 = scalar_lea.vmem %s3, 32
        %v503 = vld [vmem:[%s502] sm:$0xf]
        %v504 = vld [vmem:[%s502 + $0x4] sm:$0xf]
        %v505 = vld [vmem:[%s502 + $0x8] sm:$0xf]
        %v506 = vld [vmem:[%s502 + $0xc] sm:$0xf]
        %v507 = vld [vmem:[%s502 + $0x10] sm:$0xf]
        %v508 = vld [vmem:[%s502 + $0x14] sm:$0xf]
        %v509 = vld [vmem:[%s502 + $0x18] sm:$0xf]
        %v510 = vld [vmem:[%s502 + $0x1c] sm:$0xf]
        %v519 = vunpack.c.l.b16 %v503
        %v520 = vunpack.c.l.b16 %v504
        %v521 = vunpack.c.l.b16 %v505
        %v522 = vunpack.c.l.b16 %v506
        %v523 = vunpack.c.l.b16 %v507
        %v524 = vunpack.c.l.b16 %v508
        %v525 = vunpack.c.l.b16 %v509
        %v526 = vunpack.c.l.b16 %v510
        %v527 = vpack.c.b16 %v520, %v519
        %v528 = vpack.c.b16 %v522, %v521
        %v529 = vpack.c.b16 %v524, %v523
        %v530 = vpack.c.b16 %v526, %v525
        %vm535 = vcmask 523264
        %v537 = vsel %vm535, %v501, 0
        %539 = vmatpush.bf16.msra.mxu0 0
        %540 = vmatpush.bf16.msra.mxu0 0
        %541 = vmatpush.bf16.msra.mxu0 0
        %542 = vmatpush.bf16.msra.mxu0 0
        %543 = vmatpush.bf16.msra.mxu0 %v530
        %544 = vmatpush.bf16.msra.mxu0 %v529
        %545 = vmatpush.bf16.msra.mxu0 %v528
        %546 = vmatpush.bf16.msra.mxu0 %v527
        %547 = vmatmul.bf16.gmra.mxu0 %v537
        %v548 = vpop.f32.mrf.mxu0
        %v549 = vadd.f32 0.0, %v548
        %v550 = vpop.f32.mrf.mxu0
        %v551 = vadd.f32 0.0, %v550
        %552 = vdwg.mxu0
        %v561 = vunpack.c.l.b16 %v493
        %v562 = vunpack.c.l.b16 %v494
        %v563 = vunpack.c.l.b16 %v495
        %v564 = vunpack.c.l.b16 %v496
        %v565 = vunpack.c.l.b16 %v497
        %v566 = vunpack.c.l.b16 %v498
        %v567 = vunpack.c.l.b16 %v499
        %v568 = vunpack.c.l.b16 %v500
        %v569 = vpack.c.b16 %v562, %v561
        %v570 = vpack.c.b16 %v564, %v563
        %v571 = vpack.c.b16 %v566, %v565
        %v572 = vpack.c.b16 %v568, %v567
        %v578 = vsel %vm535, %v492, 0
        %580 = vmatpush.bf16.msra.mxu0 0
        %581 = vmatpush.bf16.msra.mxu0 0
        %582 = vmatpush.bf16.msra.mxu0 0
        %583 = vmatpush.bf16.msra.mxu0 0
        %584 = vmatpush.bf16.msra.mxu0 %v572
        %585 = vmatpush.bf16.msra.mxu0 %v571
        %586 = vmatpush.bf16.msra.mxu0 %v570
        %587 = vmatpush.bf16.msra.mxu0 %v569
        %588 = vmatmul.bf16.gmra.mxu0 %v578
        %v589 = vpop.f32.mrf.mxu0
        %v590 = vadd.f32 %v549, %v589
        %v591 = vpop.f32.mrf.mxu0
        %v592 = vadd.f32 %v551, %v591
        %593 = vdwg.mxu0
        %v594 = vpack.c.bf16 %v491, %v490
        %s595 = scalar_lea.vmem %s3, 64
        %v596 = vld [vmem:[%s595] sm:$0xf]
        %v597 = vld [vmem:[%s595 + $0x4] sm:$0xf]
        %v598 = vld [vmem:[%s595 + $0x8] sm:$0xf]
        %v599 = vld [vmem:[%s595 + $0xc] sm:$0xf]
        %v600 = vld [vmem:[%s595 + $0x10] sm:$0xf]
        %v601 = vld [vmem:[%s595 + $0x14] sm:$0xf]
        %v602 = vld [vmem:[%s595 + $0x18] sm:$0xf]
        %v603 = vld [vmem:[%s595 + $0x1c] sm:$0xf]
        %v612 = vunpack.c.l.b16 %v596
        %v613 = vunpack.c.l.b16 %v597
        %v614 = vunpack.c.l.b16 %v598
        %v615 = vunpack.c.l.b16 %v599
        %v616 = vunpack.c.l.b16 %v600
        %v617 = vunpack.c.l.b16 %v601
        %v618 = vunpack.c.l.b16 %v602
        %v619 = vunpack.c.l.b16 %v603
        %v620 = vpack.c.b16 %v613, %v612
        %v621 = vpack.c.b16 %v615, %v614
        %v622 = vpack.c.b16 %v617, %v616
        %v623 = vpack.c.b16 %v619, %v618
        %v629 = vsel %vm535, %v594, 0
        %631 = vmatpush.bf16.msra.mxu0 0
        %632 = vmatpush.bf16.msra.mxu0 0
        %633 = vmatpush.bf16.msra.mxu0 0
        %634 = vmatpush.bf16.msra.mxu0 0
        %635 = vmatpush.bf16.msra.mxu0 %v623
        %636 = vmatpush.bf16.msra.mxu0 %v622
        %637 = vmatpush.bf16.msra.mxu0 %v621
        %638 = vmatpush.bf16.msra.mxu0 %v620
        %639 = vmatmul.bf16.gmra.mxu0 %v629
        %v640 = vpop.f32.mrf.mxu0
        %v641 = vadd.f32 0.0, %v640
        %v642 = vpop.f32.mrf.mxu0
        %v643 = vadd.f32 0.0, %v642
        %644 = vdwg.mxu0
        %v645 = vadd.f32 %v590, %v641
        %v646 = vadd.f32 %v592, %v643
        %v647 = vld [vmem:[%s4] sm:$0x1]
        %v649 = vperm.slane %v647, 0
        %v651 = vadd.f32 %v645, %v649
        %v652 = vadd.f32 %v646, %v649
        %v653 = vmax.f32 %v651, 0.0
        %v654 = vmax.f32 %v652, 0.0
        %v655 = vpack.c.bf16 %v654, %v653
        %v656 = vld [vmem:[#allocation2] sm:$0xff]
        %v657 = vld [vmem:[#allocation2 + $0x8] sm:$0xff]
        %v658 = vld [vmem:[#allocation2 + $0x10] sm:$0xff]
        %v659 = vld [vmem:[#allocation2 + $0x18] sm:$0xff]
        %v660 = vld [vmem:[#allocation2 + $0x20] sm:$0xff]
        %v661 = vld [vmem:[#allocation2 + $0x28] sm:$0xff]
        %v662 = vld [vmem:[#allocation2 + $0x30] sm:$0xff]
        %v663 = vld [vmem:[#allocation2 + $0x38] sm:$0xff]
        %v664 = vld [vmem:[%s6] sm:$0x3]
        %v666 = vperm.slane %v664, 0
        %v667 = vperm.slane %v664, 1
        %v678 = vunpack.c.l.b16 %v656
        %v679 = vunpack.c.h.b16 %v656
        %v680 = vunpack.c.l.b16 %v657
        %v681 = vunpack.c.h.b16 %v657
        %v682 = vunpack.c.l.b16 %v658
        %v683 = vunpack.c.h.b16 %v658
        %v684 = vunpack.c.l.b16 %v659
        %v685 = vunpack.c.h.b16 %v659
        %v686 = vunpack.c.l.b16 %v660
        %v687 = vunpack.c.h.b16 %v660
        %v688 = vunpack.c.l.b16 %v661
        %v689 = vunpack.c.h.b16 %v661
        %v690 = vunpack.c.l.b16 %v662
        %v691 = vunpack.c.h.b16 %v662
        %v692 = vunpack.c.l.b16 %v663
        %v693 = vunpack.c.h.b16 %v663
        %v694 = vpack.c.b16 %v680, %v678
        %v695 = vpack.c.b16 %v681, %v679
        %v696 = vpack.c.b16 %v684, %v682
        %v697 = vpack.c.b16 %v685, %v683
        %v698 = vpack.c.b16 %v688, %v686
        %v699 = vpack.c.b16 %v689, %v687
        %v700 = vpack.c.b16 %v692, %v690
        %v701 = vpack.c.b16 %v693, %v691
        %v711 = vsel %vm535, %v655, 0
        %713 = vmatpush.bf16.msra.mxu0 0
        %714 = vmatpush.bf16.msra.mxu0 0
        %715 = vmatpush.bf16.msra.mxu0 0
        %716 = vmatpush.bf16.msra.mxu0 0
        %717 = vmatpush.bf16.msra.mxu0 %v700
        %718 = vmatpush.bf16.msra.mxu0 %v698
        %719 = vmatpush.bf16.msra.mxu0 %v696
        %720 = vmatpush.bf16.msra.mxu0 %v694
        %721 = vmatmul.bf16.gmra.mxu0 %v711
        %v722 = vpop.f32.mrf.mxu0
        %v723 = vadd.f32 %v666, %v722
        %v724 = vpop.f32.mrf.mxu0
        %v725 = vadd.f32 %v666, %v724
        %726 = vdwg.mxu0
        %727 = vmatpush.bf16.msra.mxu0 0
        %728 = vmatpush.bf16.msra.mxu0 0
        %729 = vmatpush.bf16.msra.mxu0 0
        %730 = vmatpush.bf16.msra.mxu0 0
        %731 = vmatpush.bf16.msra.mxu0 %v701
        %732 = vmatpush.bf16.msra.mxu0 %v699
        %733 = vmatpush.bf16.msra.mxu0 %v697
        %734 = vmatpush.bf16.msra.mxu0 %v695
        %735 = vmatmul.bf16.gmra.mxu0 %v711
        %v736 = vpop.f32.mrf.mxu0
        %v737 = vadd.f32 %v667, %v736
        %v738 = vpop.f32.mrf.mxu0
        %v739 = vadd.f32 %v667, %v738
        %740 = vdwg.mxu0
        %v741 = vmax.f32 %v723, 0.0
        %v742 = vmax.f32 %v737, 0.0
        %v743 = vmax.f32 %v725, 0.0
        %v744 = vmax.f32 %v739, 0.0
        %v745 = vadd.f32 %v741, %v295
        %v746 = vadd.f32 %v742, %v296
        %v747 = vadd.f32 %v743, %v297
        %v748 = vadd.f32 %v744, %v298
        %v749 = vmax.f32 %v745, 0.0
        %v750 = vmax.f32 %v746, 0.0
        %v751 = vmax.f32 %v747, 0.0
        %v752 = vmax.f32 %v748, 0.0
        %753 = vst [vmem:[%s288] sm:$0xff] %v749
        %754 = vst [vmem:[%s288 + $0x8] sm:$0xff] %v750
        %755 = vst [vmem:[%s288 + $0x10] sm:$0xff] %v751
        %756 = vst [vmem:[%s288 + $0x18] sm:$0xff] %v752
        %s757 = sand.u32 %s182, 1
        %s758 = scalar_lea.sflag [#allocation4], %s757
        %s759 = sand.u32 %s182, 1
        %s760 = smul.addr %s759, 32
        %s761 = scalar_lea.vmem [#allocation5], %s760
        // Predicated region
        $region53: #{tpu_custom_call.1} parent=47 // pred_check
          %p762 = pneg %p192
        $region54: #{tpu_custom_call.1} parent=47 // pred_check_branch
          %764 = sbr.rel (%p762) target = $region56
        $region55: #{tpu_custom_call.1} parent=47 // pred_region
          %766 = vsyncadd %s758, 0
          %s767 = smul.addr %s22, 4
          %s768 = smul.addr %s767, 8
          %s769 = scalar_lea.hbm %s7, %s768
          %s770 = sshll.u32 %s761, 4
          %s771 = int_to_ptr.vmem [resolvable:$true] %s770
          %s772 = sshll.u32 %s769, 4
          %s773 = int_to_ptr.hbm [resolvable:$true] %s772
          %778 = dma.vmem_to_hbm [thread:$0]  %s771, 512, %s773, %s758, 256, 256, 16
        $region56: #{tpu_custom_call.1} parent=47 // pred_fallthru
          _
      $region48: #{tpu_custom_call.1} parent=5 // pred_fallthru
        _
      %p779 = scmp.le.s32.totalorder 2, %s17
      // Predicated region
      $region57: #{tpu_custom_call.1} parent=5 // pred_check
        %p780 = pneg %p779
      $region58: #{tpu_custom_call.1} parent=5 // pred_check_branch
        %782 = sbr.rel (%p780) target = $region60
      $region59: #{tpu_custom_call.1} parent=5 // pred_region
        %s783 = ssub.s32 %s17, 2
        // Predicated region
        $region61: #{tpu_custom_call.1} parent=59 // pred_check
          %p784 = pneg %p198
        $region62: #{tpu_custom_call.1} parent=59 // pred_check_branch
          %786 = sbr.rel (%p784) target = $region64
        $region63: #{tpu_custom_call.1} parent=59 // pred_region
          %s787 = sand.u32 %s183, 1
          %s788 = scalar_lea.sflag [#allocation4], %s787
          %s789 = sand.u32 %s183, 1
          %s790 = smul.addr %s789, 32
          %s791 = scalar_lea.vmem [#allocation5], %s790
          %793 = dma.done %s788, 512
        $region64: #{tpu_custom_call.1} parent=59 // pred_fallthru
          _
      $region60: #{tpu_custom_call.1} parent=5 // pred_fallthru
        _
    $region6: #{tpu_custom_call.1} parent=1 // loop_footer
      %s21 = sadd.s32 1, %s17
    $region7: #{tpu_custom_call.1} parent=1 // loop_footer_branch
      %16 = sbr.rel target = $region3
    $region8: #{tpu_custom_call.1} parent=1 // loop_exit
      _
    %794 = vsyncpa [#allocation3], 1
    %s795 = scalar_lea.sflag [#allocation3], 1
    %796 = vsyncpa %s795, 1
    %797 = vsyncpa [#allocation4], 1
    %s798 = scalar_lea.sflag [#allocation4], 1
    %799 = vsyncpa %s798, 1

</llo_original>
